<compile_context>
chip_gen: v6e
topology: v6e:2x2x1
jax: 0.10.0
libtpu: 0.0.40
codegen_flags: <defaults>
</compile_context>

<pallas_src>
import functools

import jax
import jax.numpy as jnp
from jax import lax
from jax.experimental import pallas as pl
from jax.experimental.pallas import tpu as pltpu

C_IN, C_OUT, H, W = 13, 64, 8, 8
HW = H * W                 # 64 pixels per image
C_HALF = C_OUT // 2        # 32 rows in the lane-dense output view
LANES = 2 * HW             # 128-lane dense output rows
EPS = 1e-5                 # nn.BatchNorm2d default

CHUNK = 8                  # images per MXU call   -> (64,13)@(13,512)
MAX_T_IMG = 64             # images per grid step  -> 8 chunks / step


def _pick_t_img(n):
    """Images per grid step: multiple of CHUNK, <= MAX_T_IMG, and (when the
    batch allows it) small enough that the grid has >= 2 steps (v7x has 2 TCs)."""
    if n >= 2 * MAX_T_IMG:
        return MAX_T_IMG
    if n >= 2 * CHUNK:
        half = (n + 1) // 2
        return min(MAX_T_IMG, ((half + CHUNK - 1) // CHUNK) * CHUNK)
    return CHUNK


# ---------------------------------------------------------------------------
# Kernel: folded conv (BN scale pre-multiplied into W) + BN shift + ReLU,
# written straight into the lane-dense (N, 32, 128) view of NCHW.
# ---------------------------------------------------------------------------
def _conv_bn_relu_kernel(x_ref, w_ref, shift_ref, o_ref, *, t_img):
    # x_ref:     (C_IN, t_img*HW)       channel-major pixels of t_img images
    # w_ref:     (C_OUT, C_IN)          BN-scale folded, rows = [even ch ; odd ch]
    # shift_ref: (C_OUT, 1)             BN shift, same row permutation
    # o_ref:     (t_img, C_HALF, 2*HW)  lane-dense view of the NCHW output
    w = w_ref[...]
    shift = shift_ref[...]
    for c in range(t_img // CHUNK):                       # static unroll (<= 8)
        xc = x_ref[:, c * CHUNK * HW:(c + 1) * CHUNK * HW]          # (13, 512)
        y = jnp.dot(w, xc, preferred_element_type=jnp.float32) + shift
        y = jnp.maximum(y, 0.0)                                     # (64, 512)
        for j in range(CHUNK):                            # stores only
            col = j * HW
            o_ref[c * CHUNK + j] = jnp.concatenate(
                [y[:C_HALF, col:col + HW],    # channels 0,2,..,62 -> lanes 0:64
                 y[C_HALF:, col:col + HW]],   # channels 1,3,..,63 -> lanes 64:128
                axis=1)


def conv_block_forward(s, w, b, gamma, beta):
    """Replicates ConvBlock.forward (training-mode BatchNorm).

    s     : anything reshapeable to (-1, 13, 8, 8)  (NCHW, like PyTorch)
    w     : (13, 64)  == torch conv1.weight.reshape(64, 13).T
    b     : (64,)     == conv1.bias  (unused: cancels exactly under batch-stat BN)
    gamma : (64,)     == bn1.weight
    beta  : (64,)     == bn1.bias
    returns (N, 64, 8, 8) float32 (NCHW)
    """
    del b  # conv bias is removed exactly by BatchNorm's batch-mean subtraction

    x = jnp.asarray(s, jnp.float32).reshape(-1, C_IN, HW)     # (N, 13, 64) NCHW view
    n = x.shape[0]
    w_oc = jnp.asarray(w, jnp.float32).T                      # (C_OUT, C_IN)

    # ---- batch stats from input-side moments (tiny; plain XLA) -----------
    m = jnp.float32(n * HW)
    xsum = jnp.sum(x, axis=(0, 2))                            # (13,)
    gram = jnp.einsum("ncp,ndp->cd", x, x)                    # (13, 13)
    mean = (w_oc @ xsum) / m                                  # (C_OUT,)
    ey2 = jnp.sum((w_oc @ gram) * w_oc, axis=1) / m           # diag(W S W^T)/m
    var = jnp.maximum(ey2 - mean * mean, 0.0)
    scale = jnp.asarray(gamma, jnp.float32) * lax.rsqrt(var + EPS)
    shift = jnp.asarray(beta, jnp.float32) - mean * scale

    # ---- fold scale into weights; even/odd row permutation (free) --------
    w_s = w_oc * scale[:, None]                               # (C_OUT, C_IN)
    w_perm = jnp.concatenate([w_s[0::2], w_s[1::2]], axis=0)  # rows = [even; odd]
    shift_perm = jnp.concatenate([shift[0::2], shift[1::2]])[:, None]  # (C_OUT, 1)

    # ---- channel-major input, zero-padded to a multiple of the tile ------
    t_img = _pick_t_img(n)
    n_pad = ((n + t_img - 1) // t_img) * t_img
    x_cm = jnp.transpose(x, (1, 0, 2)).reshape(C_IN, n * HW)  # (13, N*64)
    if n_pad != n:
        x_cm = jnp.pad(x_cm, ((0, 0), (0, (n_pad - n) * HW)))

    out = pl.pallas_call(
        functools.partial(_conv_bn_relu_kernel, t_img=t_img),
        out_shape=jax.ShapeDtypeStruct((n_pad, C_HALF, LANES), jnp.float32),
        grid_spec=pltpu.PrefetchScalarGridSpec(
            num_scalar_prefetch=0,
            grid=(n_pad // t_img,),
            in_specs=[
                pl.BlockSpec((C_IN, t_img * HW), lambda i: (0, i)),
                pl.BlockSpec((C_OUT, C_IN), lambda i: (0, 0)),
                pl.BlockSpec((C_OUT, 1), lambda i: (0, 0)),
            ],
            out_specs=pl.BlockSpec((t_img, C_HALF, LANES),
                                   lambda i: (i, 0, 0)),
        ),
        compiler_params=pltpu.CompilerParams(
            dimension_semantics=("parallel",)),
        cost_estimate=pl.CostEstimate(
            flops=2 * n_pad * HW * C_IN * C_OUT + 2 * n_pad * HW * C_OUT,
            transcendentals=0,
            bytes_accessed=4 * (n_pad * C_IN * HW + n_pad * C_OUT * HW
                                + C_OUT * (C_IN + 1))),
    )(x_cm, w_perm, shift_perm)

    # Drop padded images; (n, 32, 128) is a pure row-major view of NCHW
    # (n, 64, 8, 8), so the reshape is free.
    return out[:n].reshape(n, C_OUT, H, W)


def _reference(s, w, b, gamma, beta):
    x = s.reshape(-1, C_IN, H, W).astype(jnp.float32)
    # 1x1 conv == einsum over the channel dim (bias included here; it cancels
    # inside BatchNorm, which the kernel exploits).
    y = jnp.einsum("nchw,co->nohw", x, w) + b[None, :, None, None]
    mean = jnp.mean(y, axis=(0, 2, 3), keepdims=True)
    var = jnp.mean((y - mean) ** 2, axis=(0, 2, 3), keepdims=True)
    y = (y - mean) / jnp.sqrt(var + EPS)
    y = y * gamma[None, :, None, None] + beta[None, :, None, None]
    return jnp.maximum(y, 0.0)


if __name__ == "__main__":
    key = jax.random.PRNGKey(0)
    kx, kw, kb, kg, kbe = jax.random.split(key, 5)

    # Deterministic synthetic parameters (shapes from the module's __init__).
    # conv1: Conv2d(13, 64, k=1) -> weight (64,13,1,1) stored here as (13,64).
    w = jax.random.normal(kw, (C_IN, C_OUT), jnp.float32) * 0.1
    b = jax.random.normal(kb, (C_OUT,), jnp.float32) * 0.1
    # bn1: BatchNorm2d(64) affine params.
    gamma = 1.0 + 0.1 * jax.random.normal(kg, (C_OUT,), jnp.float32)
    beta = 0.1 * jax.random.normal(kbe, (C_OUT,), jnp.float32)

    # Input: batch=2, NCHW (2, 13, 8, 8).
    x = jax.random.normal(kx, (2, C_IN, H, W), jnp.float32)

    out = conv_block_forward(x, w, b, gamma, beta)
    out = jax.block_until_ready(out)

    ref = _reference(x, w, b, gamma, beta)
    assert out.shape == (2, C_OUT, H, W), out.shape
    assert jnp.allclose(out, ref, atol=1e-4, rtol=1e-4), float(
        jnp.max(jnp.abs(out - ref)))

    print("KERNEL_OK")
</pallas_src>

<mosaic_0001>
module attributes {stable_mosaic.version = 11 : i64} {
  func.func @_conv_bn_relu_kernel(%arg0: i32, %arg1: memref<13x512xf32, #tpu.memory_space<vmem>>, %arg2: memref<64x13xf32, #tpu.memory_space<vmem>>, %arg3: memref<64x1xf32, #tpu.memory_space<vmem>>, %arg4: memref<8x32x128xf32, #tpu.memory_space<vmem>>) attributes {dimension_semantics = [#tpu.dimension_semantics<parallel>], iteration_bounds = array<i64: 1>, scalar_prefetch = 0 : i64, scratch_operands = 0 : i64, tpu.core_type = #tpu.core_type<tc>, window_params = [{transform_indices = @transform_0, window_bounds = array<i64: 13, 512>}, {pipeline_mode = #tpu.pipeline_mode<synchronous>, transform_indices = @transform_1, window_bounds = array<i64: 64, 13>}, {pipeline_mode = #tpu.pipeline_mode<synchronous>, transform_indices = @transform_2, window_bounds = array<i64: 64, 1>}, {transform_indices = @transform_3, window_bounds = array<i64: 8, 32, 128>}]} {
    %c0 = arith.constant 0 : index
    %c0_0 = arith.constant 0 : index
    %0 = vector.load %arg2[%c0, %c0_0] : memref<64x13xf32, #tpu.memory_space<vmem>>, vector<64x13xf32>
    %c0_1 = arith.constant 0 : index
    %c0_2 = arith.constant 0 : index
    %1 = vector.load %arg3[%c0_1, %c0_2] : memref<64x1xf32, #tpu.memory_space<vmem>>, vector<64x1xf32>
    %c0_3 = arith.constant 0 : index
    %c0_4 = arith.constant 0 : index
    %2 = vector.load %arg1[%c0_3, %c0_4] : memref<13x512xf32, #tpu.memory_space<vmem>>, vector<13x512xf32>
    %cst = arith.constant dense<0.000000e+00> : vector<64x512xf32>
    %3 = tpu.matmul %0, %2, %cst {dimension_numbers = #tpu.dot_dimension_numbers<[1], [0], [0], [1], [0, 0, 1, 1], [], []>} : vector<64x13xf32>, vector<13x512xf32>, vector<64x512xf32> -> vector<64x512xf32>
    %4 = vector.broadcast %1 : vector<64x1xf32> to vector<64x512xf32>
    %5 = arith.addf %3, %4 : vector<64x512xf32>
    %cst_5 = arith.constant 0.000000e+00 : f32
    %6 = vector.broadcast %cst_5 : f32 to vector<64x512xf32>
    %7 = arith.maximumf %5, %6 : vector<64x512xf32>
    %8 = vector.extract_strided_slice %7 {offsets = [0, 0], sizes = [32, 64], strides = [1, 1]} : vector<64x512xf32> to vector<32x64xf32>
    %9 = vector.extract_strided_slice %7 {offsets = [32, 0], sizes = [32, 64], strides = [1, 1]} : vector<64x512xf32> to vector<32x64xf32>
    %10 = tpu.concatenate %8, %9 in 1 : vector<32x64xf32>, vector<32x64xf32> -> vector<32x128xf32>
    %c0_6 = arith.constant 0 : index
    %c0_7 = arith.constant 0 : index
    %c0_8 = arith.constant 0 : index
    %11 = vector.load %arg4[%c0_6, %c0_7, %c0_8] : memref<8x32x128xf32, #tpu.memory_space<vmem>>, vector<1x32x128xf32>
    %12 = vector.shape_cast %11 : vector<1x32x128xf32> to vector<32x128xf32>
    %13 = vector.shape_cast %10 : vector<32x128xf32> to vector<1x32x128xf32>
    tpu.vector_store %arg4[%c0_6, %c0_7, %c0_8], %13 {strides = array<i32>} : memref<8x32x128xf32, #tpu.memory_space<vmem>>, vector<1x32x128xf32>,
    %14 = vector.extract_strided_slice %7 {offsets = [0, 64], sizes = [32, 64], strides = [1, 1]} : vector<64x512xf32> to vector<32x64xf32>
    %15 = vector.extract_strided_slice %7 {offsets = [32, 64], sizes = [32, 64], strides = [1, 1]} : vector<64x512xf32> to vector<32x64xf32>
    %16 = tpu.concatenate %14, %15 in 1 : vector<32x64xf32>, vector<32x64xf32> -> vector<32x128xf32>
    %c1 = arith.constant 1 : index
    %c0_9 = arith.constant 0 : index
    %c0_10 = arith.constant 0 : index
    %17 = vector.load %arg4[%c1, %c0_9, %c0_10] : memref<8x32x128xf32, #tpu.memory_space<vmem>>, vector<1x32x128xf32>
    %18 = vector.shape_cast %17 : vector<1x32x128xf32> to vector<32x128xf32>
    %19 = vector.shape_cast %16 : vector<32x128xf32> to vector<1x32x128xf32>
    tpu.vector_store %arg4[%c1, %c0_9, %c0_10], %19 {strides = array<i32>} : memref<8x32x128xf32, #tpu.memory_space<vmem>>, vector<1x32x128xf32>,
    %20 = vector.extract_strided_slice %7 {offsets = [0, 128], sizes = [32, 64], strides = [1, 1]} : vector<64x512xf32> to vector<32x64xf32>
    %21 = vector.extract_strided_slice %7 {offsets = [32, 128], sizes = [32, 64], strides = [1, 1]} : vector<64x512xf32> to vector<32x64xf32>
    %22 = tpu.concatenate %20, %21 in 1 : vector<32x64xf32>, vector<32x64xf32> -> vector<32x128xf32>
    %c2 = arith.constant 2 : index
    %c0_11 = arith.constant 0 : index
    %c0_12 = arith.constant 0 : index
    %23 = vector.load %arg4[%c2, %c0_11, %c0_12] : memref<8x32x128xf32, #tpu.memory_space<vmem>>, vector<1x32x128xf32>
    %24 = vector.shape_cast %23 : vector<1x32x128xf32> to vector<32x128xf32>
    %25 = vector.shape_cast %22 : vector<32x128xf32> to vector<1x32x128xf32>
    tpu.vector_store %arg4[%c2, %c0_11, %c0_12], %25 {strides = array<i32>} : memref<8x32x128xf32, #tpu.memory_space<vmem>>, vector<1x32x128xf32>,
    %26 = vector.extract_strided_slice %7 {offsets = [0, 192], sizes = [32, 64], strides = [1, 1]} : vector<64x512xf32> to vector<32x64xf32>
    %27 = vector.extract_strided_slice %7 {offsets = [32, 192], sizes = [32, 64], strides = [1, 1]} : vector<64x512xf32> to vector<32x64xf32>
    %28 = tpu.concatenate %26, %27 in 1 : vector<32x64xf32>, vector<32x64xf32> -> vector<32x128xf32>
    %c3 = arith.constant 3 : index
    %c0_13 = arith.constant 0 : index
    %c0_14 = arith.constant 0 : index
    %29 = vector.load %arg4[%c3, %c0_13, %c0_14] : memref<8x32x128xf32, #tpu.memory_space<vmem>>, vector<1x32x128xf32>
    %30 = vector.shape_cast %29 : vector<1x32x128xf32> to vector<32x128xf32>
    %31 = vector.shape_cast %28 : vector<32x128xf32> to vector<1x32x128xf32>
    tpu.vector_store %arg4[%c3, %c0_13, %c0_14], %31 {strides = array<i32>} : memref<8x32x128xf32, #tpu.memory_space<vmem>>, vector<1x32x128xf32>,
    %32 = vector.extract_strided_slice %7 {offsets = [0, 256], sizes = [32, 64], strides = [1, 1]} : vector<64x512xf32> to vector<32x64xf32>
    %33 = vector.extract_strided_slice %7 {offsets = [32, 256], sizes = [32, 64], strides = [1, 1]} : vector<64x512xf32> to vector<32x64xf32>
    %34 = tpu.concatenate %32, %33 in 1 : vector<32x64xf32>, vector<32x64xf32> -> vector<32x128xf32>
    %c4 = arith.constant 4 : index
    %c0_15 = arith.constant 0 : index
    %c0_16 = arith.constant 0 : index
    %35 = vector.load %arg4[%c4, %c0_15, %c0_16] : memref<8x32x128xf32, #tpu.memory_space<vmem>>, vector<1x32x128xf32>
    %36 = vector.shape_cast %35 : vector<1x32x128xf32> to vector<32x128xf32>
    %37 = vector.shape_cast %34 : vector<32x128xf32> to vector<1x32x128xf32>
    tpu.vector_store %arg4[%c4, %c0_15, %c0_16], %37 {strides = array<i32>} : memref<8x32x128xf32, #tpu.memory_space<vmem>>, vector<1x32x128xf32>,
    %38 = vector.extract_strided_slice %7 {offsets = [0, 320], sizes = [32, 64], strides = [1, 1]} : vector<64x512xf32> to vector<32x64xf32>
    %39 = vector.extract_strided_slice %7 {offsets = [32, 320], sizes = [32, 64], strides = [1, 1]} : vector<64x512xf32> to vector<32x64xf32>
    %40 = tpu.concatenate %38, %39 in 1 : vector<32x64xf32>, vector<32x64xf32> -> vector<32x128xf32>
    %c5 = arith.constant 5 : index
    %c0_17 = arith.constant 0 : index
    %c0_18 = arith.constant 0 : index
    %41 = vector.load %arg4[%c5, %c0_17, %c0_18] : memref<8x32x128xf32, #tpu.memory_space<vmem>>, vector<1x32x128xf32>
    %42 = vector.shape_cast %41 : vector<1x32x128xf32> to vector<32x128xf32>
    %43 = vector.shape_cast %40 : vector<32x128xf32> to vector<1x32x128xf32>
    tpu.vector_store %arg4[%c5, %c0_17, %c0_18], %43 {strides = array<i32>} : memref<8x32x128xf32, #tpu.memory_space<vmem>>, vector<1x32x128xf32>,
    %44 = vector.extract_strided_slice %7 {offsets = [0, 384], sizes = [32, 64], strides = [1, 1]} : vector<64x512xf32> to vector<32x64xf32>
    %45 = vector.extract_strided_slice %7 {offsets = [32, 384], sizes = [32, 64], strides = [1, 1]} : vector<64x512xf32> to vector<32x64xf32>
    %46 = tpu.concatenate %44, %45 in 1 : vector<32x64xf32>, vector<32x64xf32> -> vector<32x128xf32>
    %c6 = arith.constant 6 : index
    %c0_19 = arith.constant 0 : index
    %c0_20 = arith.constant 0 : index
    %47 = vector.load %arg4[%c6, %c0_19, %c0_20] : memref<8x32x128xf32, #tpu.memory_space<vmem>>, vector<1x32x128xf32>
    %48 = vector.shape_cast %47 : vector<1x32x128xf32> to vector<32x128xf32>
    %49 = vector.shape_cast %46 : vector<32x128xf32> to vector<1x32x128xf32>
    tpu.vector_store %arg4[%c6, %c0_19, %c0_20], %49 {strides = array<i32>} : memref<8x32x128xf32, #tpu.memory_space<vmem>>, vector<1x32x128xf32>,
    %50 = vector.extract_strided_slice %7 {offsets = [0, 448], sizes = [32, 64], strides = [1, 1]} : vector<64x512xf32> to vector<32x64xf32>
    %51 = vector.extract_strided_slice %7 {offsets = [32, 448], sizes = [32, 64], strides = [1, 1]} : vector<64x512xf32> to vector<32x64xf32>
    %52 = tpu.concatenate %50, %51 in 1 : vector<32x64xf32>, vector<32x64xf32> -> vector<32x128xf32>
    %c7 = arith.constant 7 : index
    %c0_21 = arith.constant 0 : index
    %c0_22 = arith.constant 0 : index
    %53 = vector.load %arg4[%c7, %c0_21, %c0_22] : memref<8x32x128xf32, #tpu.memory_space<vmem>>, vector<1x32x128xf32>
    %54 = vector.shape_cast %53 : vector<1x32x128xf32> to vector<32x128xf32>
    %55 = vector.shape_cast %52 : vector<32x128xf32> to vector<1x32x128xf32>
    tpu.vector_store %arg4[%c7, %c0_21, %c0_22], %55 {strides = array<i32>} : memref<8x32x128xf32, #tpu.memory_space<vmem>>, vector<1x32x128xf32>,
    return
  }
  func.func @transform_0(%arg0: i32) -> (i32, i32) {
    %c0_i32 = arith.constant 0 : i32
    %c0_i32_0 = arith.constant 0 : i32
    return %c0_i32, %arg0 : i32, i32
  }
  func.func @transform_1(%arg0: i32) -> (i32, i32) {
    %c0_i32 = arith.constant 0 : i32
    %c0_i32_0 = arith.constant 0 : i32
    %c0_i32_1 = arith.constant 0 : i32
    return %c0_i32, %c0_i32_0 : i32, i32
  }
  func.func @transform_2(%arg0: i32) -> (i32, i32) {
    %c0_i32 = arith.constant 0 : i32
    %c0_i32_0 = arith.constant 0 : i32
    %c0_i32_1 = arith.constant 0 : i32
    return %c0_i32, %c0_i32_0 : i32, i32
  }
  func.func @transform_3(%arg0: i32) -> (i32, i32, i32) {
    %c0_i32 = arith.constant 0 : i32
    %c0_i32_0 = arith.constant 0 : i32
    %c0_i32_1 = arith.constant 0 : i32
    return %arg0, %c0_i32, %c0_i32_0 : i32, i32, i32
  }
}

</mosaic_0001>

<llo_original>
// kernel: tpu_custom_call.1
$region0: #{tpu_custom_call.1}
  #allocation0 [shape = 'u32[]', space=smem, size = 0x4, offset = 0x4, fixed_abs, tag = 'smem constant byte address 0x4 - core index']
  #allocation1 [shape = 'u32[144,128]{1,0:T(1,128)}', space=vmem, size = 0x12000, scoped, tag = 'internal scratch']
  %s0 = inlined_call_operand.vmem [shape: f32[13,512], index: 0, kind: input, shape index: {}]
  %s1 = inlined_call_operand.vmem [shape: f32[64,13], index: 1, kind: input, shape index: {}]
  %s2 = inlined_call_operand.vmem [shape: f32[64,1], index: 2, kind: input, shape index: {}]
  %s3 = inlined_call_operand.hbm [shape: f32[8,32,128], index: 3, kind: output, shape index: {}]
  %s4 = sld [smem:[#allocation0]]
  $region22: #{tpu_custom_call.1} parent=0
    _
  %s6 = ssub.s32 1, %s4
  %s7 = scalar_select 0, %s6, %s4
  $region1: #{tpu_custom_call.1} parent=0
    #allocation2 [shape = 'u8[131072]{0}', space=vmem, size = 0x20000, scoped, tag = 'output window, operand 0, single buffered']
    #allocation3 [shape = 's32[1]{0}', space=sflag, size = 0x4, scoped, tag = 'scoped memory for tpu_custom_call.1']
    %8 = vsyncpa [#allocation3], 0
    // Predicated region
    $region2: #{tpu_custom_call.1} parent=1 // pred_check
      _
    $region3: #{tpu_custom_call.1} parent=1 // pred_check_branch
      %10 = sbr.rel (0) target = $region5
    $region4: #{tpu_custom_call.1} parent=1 // pred_region
      _
    $region5: #{tpu_custom_call.1} parent=1 // pred_fallthru
      _
    // Predicated region
    $region6: #{tpu_custom_call.1} parent=1 // pred_check
      _
    $region7: #{tpu_custom_call.1} parent=1 // pred_check_branch
      %12 = sbr.rel (0) target = $region9
    $region8: #{tpu_custom_call.1} parent=1 // pred_region
      _
    $region9: #{tpu_custom_call.1} parent=1 // pred_fallthru
      _
    // Predicated region
    $region10: #{tpu_custom_call.1} parent=1 // pred_check
      _
    $region11: #{tpu_custom_call.1} parent=1 // pred_check_branch
      %14 = sbr.rel (0) target = $region13
    $region12: #{tpu_custom_call.1} parent=1 // pred_region
      _
    $region13: #{tpu_custom_call.1} parent=1 // pred_fallthru
      _
    %v15 = vld [vmem:[%s1] sm:$0xff]
    %v16 = vld [vmem:[%s1 + $0x8] sm:$0xff]
    %v17 = vld [vmem:[%s1 + $0x10] sm:$0xff]
    %v18 = vld [vmem:[%s1 + $0x18] sm:$0xff]
    %v19 = vld [vmem:[%s1 + $0x20] sm:$0xff]
    %v20 = vld [vmem:[%s1 + $0x28] sm:$0xff]
    %v21 = vld [vmem:[%s1 + $0x30] sm:$0xff]
    %v22 = vld [vmem:[%s1 + $0x38] sm:$0xff]
    %v23 = vld [vmem:[%s2] sm:$0xff]
    %v24 = vld [vmem:[%s2 + $0x8] sm:$0xff]
    %v25 = vld [vmem:[%s2 + $0x10] sm:$0xff]
    %v26 = vld [vmem:[%s2 + $0x18] sm:$0xff]
    %v27 = vld [vmem:[%s2 + $0x20] sm:$0xff]
    %v28 = vld [vmem:[%s2 + $0x28] sm:$0xff]
    %v29 = vld [vmem:[%s2 + $0x30] sm:$0xff]
    %v30 = vld [vmem:[%s2 + $0x38] sm:$0xff]
    %v31 = vld [vmem:[%s0] sm:$0xff]
    %v32 = vld [vmem:[%s0 + $0x8] sm:$0xff]
    %v33 = vld [vmem:[%s0 + $0x10] sm:$0xff]
    %v34 = vld [vmem:[%s0 + $0x18] sm:$0xff]
    %v35 = vld [vmem:[%s0 + $0x20] sm:$0x1f]
    %v36 = vld [vmem:[%s0 + $0x28] sm:$0x1f]
    %v37 = vld [vmem:[%s0 + $0x30] sm:$0x1f]
    %v38 = vld [vmem:[%s0 + $0x38] sm:$0x1f]
    %40 = vset.pattern.permute.xlu0 0
    %41 = vperm.xlu0 %40, %v23
    %v42 = vpop.permute.xlu0 %41
    %45 = vset.pattern.permute.xlu0 0
    %46 = vperm.xlu0 %45, %v24
    %v47 = vpop.permute.xlu0 %46
    %50 = vset.pattern.permute.xlu0 0
    %51 = vperm.xlu0 %50, %v25
    %v52 = vpop.permute.xlu0 %51
    %55 = vset.pattern.permute.xlu0 0
    %56 = vperm.xlu0 %55, %v26
    %v57 = vpop.permute.xlu0 %56
    %60 = vset.pattern.permute.xlu0 0
    %61 = vperm.xlu0 %60, %v27
    %v62 = vpop.permute.xlu0 %61
    %65 = vset.pattern.permute.xlu0 0
    %66 = vperm.xlu0 %65, %v28
    %v67 = vpop.permute.xlu0 %66
    %70 = vset.pattern.permute.xlu0 0
    %71 = vperm.xlu0 %70, %v29
    %v72 = vpop.permute.xlu0 %71
    %75 = vset.pattern.permute.xlu0 0
    %76 = vperm.xlu0 %75, %v30
    %v77 = vpop.permute.xlu0 %76
    %vm79 = vcmask 105472
    %v81 = vsel %vm79, %v15, 0
    %v84 = vsel %vm79, %v16, 0
    %v87 = vsel %vm79, %v17, 0
    %v90 = vsel %vm79, %v18, 0
    %v93 = vsel %vm79, %v19, 0
    %v96 = vsel %vm79, %v20, 0
    %v99 = vsel %vm79, %v21, 0
    %v102 = vsel %vm79, %v22, 0
    %vm104 = vcmask 1044480
    %v106 = vsel %vm104, %v35, 0
    %v109 = vsel %vm104, %v36, 0
    %v112 = vsel %vm104, %v37, 0
    %v115 = vsel %vm104, %v38, 0
    %117 = vmatprep.subr.mxu0 0.0
    %118 = vmatpush1.msra.mxu0 0.0
    %119 = vmatprep.subr.mxu0 0.0
    %120 = vmatpush1.msra.mxu0 0.0
    %121 = vmatprep.subr.mxu0 0.0
    %122 = vmatpush1.msra.mxu0 0.0
    %123 = vmatprep.subr.mxu0 0.0
    %124 = vmatpush1.msra.mxu0 0.0
    %125 = vmatprep.subr.mxu0 0.0
    %126 = vmatpush1.msra.mxu0 0.0
    %127 = vmatprep.subr.mxu0 0.0
    %128 = vmatpush1.msra.mxu0 0.0
    %129 = vmatprep.subr.mxu0 0.0
    %130 = vmatpush1.msra.mxu0 0.0
    %131 = vmatprep.subr.mxu0 0.0
    %132 = vmatpush1.msra.mxu0 0.0
    %133 = vmatprep.subr.mxu0 0.0
    %134 = vmatpush1.msra.mxu0 0.0
    %135 = vmatprep.subr.mxu0 0.0
    %136 = vmatpush1.msra.mxu0 0.0
    %137 = vmatprep.subr.mxu0 0.0
    %138 = vmatpush1.msra.mxu0 0.0
    %139 = vmatprep.subr.mxu0 0.0
    %140 = vmatpush1.msra.mxu0 0.0
    %141 = vmatprep.subr.mxu0 0.0
    %142 = vmatpush1.msra.mxu0 0.0
    %143 = vmatprep.subr.mxu0 0.0
    %144 = vmatpush1.msra.mxu0 0.0
    %145 = vmatprep.subr.mxu0 %v109
    %146 = vmatpush1.msra.mxu0 %v106
    %147 = vmatprep.subr.mxu0 %v32
    %148 = vmatpush1.msra.mxu0 %v31
    %149 = vmatprep.subr.mxu0 0.0
    %150 = vmatpush2.msra.mxu0 0.0
    %151 = vmatprep.subr.mxu0 0.0
    %152 = vmatpush2.msra.mxu0 0.0
    %153 = vmatprep.subr.mxu0 0.0
    %154 = vmatpush2.msra.mxu0 0.0
    %155 = vmatprep.subr.mxu0 0.0
    %156 = vmatpush2.msra.mxu0 0.0
    %157 = vmatprep.subr.mxu0 0.0
    %158 = vmatpush2.msra.mxu0 0.0
    %159 = vmatprep.subr.mxu0 0.0
    %160 = vmatpush2.msra.mxu0 0.0
    %161 = vmatprep.subr.mxu0 0.0
    %162 = vmatpush2.msra.mxu0 0.0
    %163 = vmatprep.subr.mxu0 0.0
    %164 = vmatpush2.msra.mxu0 0.0
    %165 = vmatprep.subr.mxu0 0.0
    %166 = vmatpush2.msra.mxu0 0.0
    %167 = vmatprep.subr.mxu0 0.0
    %168 = vmatpush2.msra.mxu0 0.0
    %169 = vmatprep.subr.mxu0 0.0
    %170 = vmatpush2.msra.mxu0 0.0
    %171 = vmatprep.subr.mxu0 0.0
    %172 = vmatpush2.msra.mxu0 0.0
    %173 = vmatprep.subr.mxu0 0.0
    %174 = vmatpush2.msra.mxu0 0.0
    %175 = vmatprep.subr.mxu0 0.0
    %176 = vmatpush2.msra.mxu0 0.0
    %177 = vmatprep.subr.mxu0 0.0
    %178 = vmatpush2.msra.mxu0 0.0
    %179 = vmatprep.subr.mxu0 0.0
    %180 = vmatpush2.msra.mxu0 0.0
    %181 = vmatprep.mubr.f32.mxu0 0.0
    %182 = vmatmul.mubr.f32.gmra.mxu0 %v81
    %v183 = vpop.f32.mrf.mxu0
    %v184 = vadd.f32 %v42, %v183
    %v185 = vpop.f32.mrf.mxu0
    %v186 = vadd.f32 %v42, %v185
    %187 = vmatprep.mubr.f32.mxu0 0.0
    %188 = vmatmul.mubr.f32.gmra.mxu0 %v84
    %v189 = vpop.f32.mrf.mxu0
    %v190 = vadd.f32 %v47, %v189
    %v191 = vpop.f32.mrf.mxu0
    %v192 = vadd.f32 %v47, %v191
    %193 = vmatprep.mubr.f32.mxu0 0.0
    %194 = vmatmul.mubr.f32.gmra.mxu0 %v87
    %v195 = vpop.f32.mrf.mxu0
    %v196 = vadd.f32 %v52, %v195
    %v197 = vpop.f32.mrf.mxu0
    %v198 = vadd.f32 %v52, %v197
    %199 = vmatprep.mubr.f32.mxu0 0.0
    %200 = vmatmul.mubr.f32.gmra.mxu0 %v90
    %v201 = vpop.f32.mrf.mxu0
    %v202 = vadd.f32 %v57, %v201
    %v203 = vpop.f32.mrf.mxu0
    %v204 = vadd.f32 %v57, %v203
    %205 = vmatprep.mubr.f32.mxu0 0.0
    %206 = vmatmul.mubr.f32.gmra.mxu0 %v93
    %v207 = vpop.f32.mrf.mxu0
    %v208 = vadd.f32 %v62, %v207
    %v209 = vpop.f32.mrf.mxu0
    %v210 = vadd.f32 %v62, %v209
    %211 = vmatprep.mubr.f32.mxu0 0.0
    %212 = vmatmul.mubr.f32.gmra.mxu0 %v96
    %v213 = vpop.f32.mrf.mxu0
    %v214 = vadd.f32 %v67, %v213
    %v215 = vpop.f32.mrf.mxu0
    %v216 = vadd.f32 %v67, %v215
    %217 = vmatprep.mubr.f32.mxu0 0.0
    %218 = vmatmul.mubr.f32.gmra.mxu0 %v99
    %v219 = vpop.f32.mrf.mxu0
    %v220 = vadd.f32 %v72, %v219
    %v221 = vpop.f32.mrf.mxu0
    %v222 = vadd.f32 %v72, %v221
    %223 = vmatprep.mubr.f32.mxu0 0.0
    %224 = vmatmul.mubr.f32.gmra.mxu0 %v102
    %v225 = vpop.f32.mrf.mxu0
    %v226 = vadd.f32 %v77, %v225
    %v227 = vpop.f32.mrf.mxu0
    %v228 = vadd.f32 %v77, %v227
    %229 = vdwg.mxu0
    %230 = vmatprep.subr.mxu0 0.0
    %231 = vmatpush1.msra.mxu0 0.0
    %232 = vmatprep.subr.mxu0 0.0
    %233 = vmatpush1.msra.mxu0 0.0
    %234 = vmatprep.subr.mxu0 0.0
    %235 = vmatpush1.msra.mxu0 0.0
    %236 = vmatprep.subr.mxu0 0.0
    %237 = vmatpush1.msra.mxu0 0.0
    %238 = vmatprep.subr.mxu0 0.0
    %239 = vmatpush1.msra.mxu0 0.0
    %240 = vmatprep.subr.mxu0 0.0
    %241 = vmatpush1.msra.mxu0 0.0
    %242 = vmatprep.subr.mxu0 0.0
    %243 = vmatpush1.msra.mxu0 0.0
    %244 = vmatprep.subr.mxu0 0.0
    %245 = vmatpush1.msra.mxu0 0.0
    %246 = vmatprep.subr.mxu0 0.0
    %247 = vmatpush1.msra.mxu0 0.0
    %248 = vmatprep.subr.mxu0 0.0
    %249 = vmatpush1.msra.mxu0 0.0
    %250 = vmatprep.subr.mxu0 0.0
    %251 = vmatpush1.msra.mxu0 0.0
    %252 = vmatprep.subr.mxu0 0.0
    %253 = vmatpush1.msra.mxu0 0.0
    %254 = vmatprep.subr.mxu0 0.0
    %255 = vmatpush1.msra.mxu0 0.0
    %256 = vmatprep.subr.mxu0 0.0
    %257 = vmatpush1.msra.mxu0 0.0
    %258 = vmatprep.subr.mxu0 %v115
    %259 = vmatpush1.msra.mxu0 %v112
    %260 = vmatprep.subr.mxu0 %v34
    %261 = vmatpush1.msra.mxu0 %v33
    %262 = vmatprep.subr.mxu0 0.0
    %263 = vmatpush2.msra.mxu0 0.0
    %264 = vmatprep.subr.mxu0 0.0
    %265 = vmatpush2.msra.mxu0 0.0
    %266 = vmatprep.subr.mxu0 0.0
    %267 = vmatpush2.msra.mxu0 0.0
    %268 = vmatprep.subr.mxu0 0.0
    %269 = vmatpush2.msra.mxu0 0.0
    %270 = vmatprep.subr.mxu0 0.0
    %271 = vmatpush2.msra.mxu0 0.0
    %272 = vmatprep.subr.mxu0 0.0
    %273 = vmatpush2.msra.mxu0 0.0
    %274 = vmatprep.subr.mxu0 0.0
    %275 = vmatpush2.msra.mxu0 0.0
    %276 = vmatprep.subr.mxu0 0.0
    %277 = vmatpush2.msra.mxu0 0.0
    %278 = vmatprep.subr.mxu0 0.0
    %279 = vmatpush2.msra.mxu0 0.0
    %280 = vmatprep.subr.mxu0 0.0
    %281 = vmatpush2.msra.mxu0 0.0
    %282 = vmatprep.subr.mxu0 0.0
    %283 = vmatpush2.msra.mxu0 0.0
    %284 = vmatprep.subr.mxu0 0.0
    %285 = vmatpush2.msra.mxu0 0.0
    %286 = vmatprep.subr.mxu0 0.0
    %287 = vmatpush2.msra.mxu0 0.0
    %288 = vmatprep.subr.mxu0 0.0
    %289 = vmatpush2.msra.mxu0 0.0
    %290 = vmatprep.subr.mxu0 0.0
    %291 = vmatpush2.msra.mxu0 0.0
    %292 = vmatprep.subr.mxu0 0.0
    %293 = vmatpush2.msra.mxu0 0.0
    %294 = vmatprep.mubr.f32.mxu0 0.0
    %295 = vmatmul.mubr.f32.gmra.mxu0 %v81
    %v296 = vpop.f32.mrf.mxu0
    %v297 = vadd.f32 %v42, %v296
    %v298 = vpop.f32.mrf.mxu0
    %v299 = vadd.f32 %v42, %v298
    %300 = vmatprep.mubr.f32.mxu0 0.0
    %301 = vmatmul.mubr.f32.gmra.mxu0 %v84
    %v302 = vpop.f32.mrf.mxu0
    %v303 = vadd.f32 %v47, %v302
    %v304 = vpop.f32.mrf.mxu0
    %v305 = vadd.f32 %v47, %v304
    %306 = vmatprep.mubr.f32.mxu0 0.0
    %307 = vmatmul.mubr.f32.gmra.mxu0 %v87
    %v308 = vpop.f32.mrf.mxu0
    %v309 = vadd.f32 %v52, %v308
    %v310 = vpop.f32.mrf.mxu0
    %v311 = vadd.f32 %v52, %v310
    %312 = vmatprep.mubr.f32.mxu0 0.0
    %313 = vmatmul.mubr.f32.gmra.mxu0 %v90
    %v314 = vpop.f32.mrf.mxu0
    %v315 = vadd.f32 %v57, %v314
    %v316 = vpop.f32.mrf.mxu0
    %v317 = vadd.f32 %v57, %v316
    %318 = vmatprep.mubr.f32.mxu0 0.0
    %319 = vmatmul.mubr.f32.gmra.mxu0 %v93
    %v320 = vpop.f32.mrf.mxu0
    %v321 = vadd.f32 %v62, %v320
    %v322 = vpop.f32.mrf.mxu0
    %v323 = vadd.f32 %v62, %v322
    %324 = vmatprep.mubr.f32.mxu0 0.0
    %325 = vmatmul.mubr.f32.gmra.mxu0 %v96
    %v326 = vpop.f32.mrf.mxu0
    %v327 = vadd.f32 %v67, %v326
    %v328 = vpop.f32.mrf.mxu0
    %v329 = vadd.f32 %v67, %v328
    %330 = vmatprep.mubr.f32.mxu0 0.0
    %331 = vmatmul.mubr.f32.gmra.mxu0 %v99
    %v332 = vpop.f32.mrf.mxu0
    %v333 = vadd.f32 %v72, %v332
    %v334 = vpop.f32.mrf.mxu0
    %v335 = vadd.f32 %v72, %v334
    %336 = vmatprep.mubr.f32.mxu0 0.0
    %337 = vmatmul.mubr.f32.gmra.mxu0 %v102
    %v338 = vpop.f32.mrf.mxu0
    %v339 = vadd.f32 %v77, %v338
    %v340 = vpop.f32.mrf.mxu0
    %v341 = vadd.f32 %v77, %v340
    %342 = vdwg.mxu0
    %v343 = vmax.f32 %v184, 0.0
    %v344 = vmax.f32 %v186, 0.0
    %v345 = vmax.f32 %v297, 0.0
    %v346 = vmax.f32 %v299, 0.0
    %v347 = vmax.f32 %v190, 0.0
    %v348 = vmax.f32 %v192, 0.0
    %v349 = vmax.f32 %v303, 0.0
    %v350 = vmax.f32 %v305, 0.0
    %v351 = vmax.f32 %v196, 0.0
    %v352 = vmax.f32 %v198, 0.0
    %v353 = vmax.f32 %v309, 0.0
    %v354 = vmax.f32 %v311, 0.0
    %v355 = vmax.f32 %v202, 0.0
    %v356 = vmax.f32 %v204, 0.0
    %v357 = vmax.f32 %v315, 0.0
    %v358 = vmax.f32 %v317, 0.0
    %v359 = vmax.f32 %v208, 0.0
    %v360 = vmax.f32 %v210, 0.0
    %v361 = vmax.f32 %v321, 0.0
    %v362 = vmax.f32 %v323, 0.0
    %v363 = vmax.f32 %v214, 0.0
    %v364 = vmax.f32 %v216, 0.0
    %v365 = vmax.f32 %v327, 0.0
    %v366 = vmax.f32 %v329, 0.0
    %v367 = vmax.f32 %v220, 0.0
    %v368 = vmax.f32 %v222, 0.0
    %v369 = vmax.f32 %v333, 0.0
    %v370 = vmax.f32 %v335, 0.0
    %v371 = vmax.f32 %v226, 0.0
    %v372 = vmax.f32 %v228, 0.0
    %v373 = vmax.f32 %v339, 0.0
    %v374 = vmax.f32 %v341, 0.0
    %379 = vrot.lane.b32.xlu0 %v359, 64
    %v380 = vpop.permute.xlu0 %379
    %381 = vrot.lane.b32.xlu0 %v363, 64
    %v382 = vpop.permute.xlu0 %381
    %383 = vrot.lane.b32.xlu0 %v367, 64
    %v384 = vpop.permute.xlu0 %383
    %385 = vrot.lane.b32.xlu0 %v371, 64
    %v386 = vpop.permute.xlu0 %385
    %vm391 = vcmask 523264
    %v392 = vsel %vm391, %v343, %v380
    %v393 = vsel %vm391, %v347, %v382
    %v394 = vsel %vm391, %v351, %v384
    %v395 = vsel %vm391, %v355, %v386
    %396 = vst [vmem:[#allocation2] sm:$0xff] %v392
    %397 = vst [vmem:[#allocation2 + $0x8] sm:$0xff] %v393
    %398 = vst [vmem:[#allocation2 + $0x10] sm:$0xff] %v394
    %399 = vst [vmem:[#allocation2 + $0x18] sm:$0xff] %v395
    %404 = vrot.lane.b32.xlu0 %v343, 64
    %v405 = vpop.permute.xlu0 %404
    %406 = vrot.lane.b32.xlu0 %v347, 64
    %v407 = vpop.permute.xlu0 %406
    %408 = vrot.lane.b32.xlu0 %v351, 64
    %v409 = vpop.permute.xlu0 %408
    %410 = vrot.lane.b32.xlu0 %v355, 64
    %v411 = vpop.permute.xlu0 %410
    %v416 = vsel %vm391, %v405, %v359
    %v417 = vsel %vm391, %v407, %v363
    %v418 = vsel %vm391, %v409, %v367
    %v419 = vsel %vm391, %v411, %v371
    %s420 = scalar_lea.vmem [#allocation2], 32
    %421 = vst [vmem:[%s420] sm:$0xff] %v416
    %422 = vst [vmem:[%s420 + $0x8] sm:$0xff] %v417
    %423 = vst [vmem:[%s420 + $0x10] sm:$0xff] %v418
    %424 = vst [vmem:[%s420 + $0x18] sm:$0xff] %v419
    %429 = vrot.lane.b32.xlu0 %v360, 64
    %v430 = vpop.permute.xlu0 %429
    %431 = vrot.lane.b32.xlu0 %v364, 64
    %v432 = vpop.permute.xlu0 %431
    %433 = vrot.lane.b32.xlu0 %v368, 64
    %v434 = vpop.permute.xlu0 %433
    %435 = vrot.lane.b32.xlu0 %v372, 64
    %v436 = vpop.permute.xlu0 %435
    %v441 = vsel %vm391, %v344, %v430
    %v442 = vsel %vm391, %v348, %v432
    %v443 = vsel %vm391, %v352, %v434
    %v444 = vsel %vm391, %v356, %v436
    %s445 = scalar_lea.vmem [#allocation2], 64
    %446 = vst [vmem:[%s445] sm:$0xff] %v441
    %447 = vst [vmem:[%s445 + $0x8] sm:$0xff] %v442
    %448 = vst [vmem:[%s445 + $0x10] sm:$0xff] %v443
    %449 = vst [vmem:[%s445 + $0x18] sm:$0xff] %v444
    %454 = vrot.lane.b32.xlu0 %v344, 64
    %v455 = vpop.permute.xlu0 %454
    %456 = vrot.lane.b32.xlu0 %v348, 64
    %v457 = vpop.permute.xlu0 %456
    %458 = vrot.lane.b32.xlu0 %v352, 64
    %v459 = vpop.permute.xlu0 %458
    %460 = vrot.lane.b32.xlu0 %v356, 64
    %v461 = vpop.permute.xlu0 %460
    %v466 = vsel %vm391, %v455, %v360
    %v467 = vsel %vm391, %v457, %v364
    %v468 = vsel %vm391, %v459, %v368
    %v469 = vsel %vm391, %v461, %v372
    %s470 = scalar_lea.vmem [#allocation2], 96
    %471 = vst [vmem:[%s470] sm:$0xff] %v466
    %472 = vst [vmem:[%s470 + $0x8] sm:$0xff] %v467
    %473 = vst [vmem:[%s470 + $0x10] sm:$0xff] %v468
    %474 = vst [vmem:[%s470 + $0x18] sm:$0xff] %v469
    %479 = vrot.lane.b32.xlu0 %v361, 64
    %v480 = vpop.permute.xlu0 %479
    %481 = vrot.lane.b32.xlu0 %v365, 64
    %v482 = vpop.permute.xlu0 %481
    %483 = vrot.lane.b32.xlu0 %v369, 64
    %v484 = vpop.permute.xlu0 %483
    %485 = vrot.lane.b32.xlu0 %v373, 64
    %v486 = vpop.permute.xlu0 %485
    %v491 = vsel %vm391, %v345, %v480
    %v492 = vsel %vm391, %v349, %v482
    %v493 = vsel %vm391, %v353, %v484
    %v494 = vsel %vm391, %v357, %v486
    %s495 = scalar_lea.vmem [#allocation2], 128
    %496 = vst [vmem:[%s495] sm:$0xff] %v491
    %497 = vst [vmem:[%s495 + $0x8] sm:$0xff] %v492
    %498 = vst [vmem:[%s495 + $0x10] sm:$0xff] %v493
    %499 = vst [vmem:[%s495 + $0x18] sm:$0xff] %v494
    %504 = vrot.lane.b32.xlu0 %v345, 64
    %v505 = vpop.permute.xlu0 %504
    %506 = vrot.lane.b32.xlu0 %v349, 64
    %v507 = vpop.permute.xlu0 %506
    %508 = vrot.lane.b32.xlu0 %v353, 64
    %v509 = vpop.permute.xlu0 %508
    %510 = vrot.lane.b32.xlu0 %v357, 64
    %v511 = vpop.permute.xlu0 %510
    %v516 = vsel %vm391, %v505, %v361
    %v517 = vsel %vm391, %v507, %v365
    %v518 = vsel %vm391, %v509, %v369
    %v519 = vsel %vm391, %v511, %v373
    %s520 = scalar_lea.vmem [#allocation2], 160
    %521 = vst [vmem:[%s520] sm:$0xff] %v516
    %522 = vst [vmem:[%s520 + $0x8] sm:$0xff] %v517
    %523 = vst [vmem:[%s520 + $0x10] sm:$0xff] %v518
    %524 = vst [vmem:[%s520 + $0x18] sm:$0xff] %v519
    %529 = vrot.lane.b32.xlu0 %v362, 64
    %v530 = vpop.permute.xlu0 %529
    %531 = vrot.lane.b32.xlu0 %v366, 64
    %v532 = vpop.permute.xlu0 %531
    %533 = vrot.lane.b32.xlu0 %v370, 64
    %v534 = vpop.permute.xlu0 %533
    %535 = vrot.lane.b32.xlu0 %v374, 64
    %v536 = vpop.permute.xlu0 %535
    %v541 = vsel %vm391, %v346, %v530
    %v542 = vsel %vm391, %v350, %v532
    %v543 = vsel %vm391, %v354, %v534
    %v544 = vsel %vm391, %v358, %v536
    %s545 = scalar_lea.vmem [#allocation2], 192
    %546 = vst [vmem:[%s545] sm:$0xff] %v541
    %547 = vst [vmem:[%s545 + $0x8] sm:$0xff] %v542
    %548 = vst [vmem:[%s545 + $0x10] sm:$0xff] %v543
    %549 = vst [vmem:[%s545 + $0x18] sm:$0xff] %v544
    %554 = vrot.lane.b32.xlu0 %v346, 64
    %v555 = vpop.permute.xlu0 %554
    %556 = vrot.lane.b32.xlu0 %v350, 64
    %v557 = vpop.permute.xlu0 %556
    %558 = vrot.lane.b32.xlu0 %v354, 64
    %v559 = vpop.permute.xlu0 %558
    %560 = vrot.lane.b32.xlu0 %v358, 64
    %v561 = vpop.permute.xlu0 %560
    %v566 = vsel %vm391, %v555, %v362
    %v567 = vsel %vm391, %v557, %v366
    %v568 = vsel %vm391, %v559, %v370
    %v569 = vsel %vm391, %v561, %v374
    %s570 = scalar_lea.vmem [#allocation2], 224
    %571 = vst [vmem:[%s570] sm:$0xff] %v566
    %572 = vst [vmem:[%s570 + $0x8] sm:$0xff] %v567
    %573 = vst [vmem:[%s570 + $0x10] sm:$0xff] %v568
    %574 = vst [vmem:[%s570 + $0x18] sm:$0xff] %v569
    // Predicated region
    $region14: #{tpu_custom_call.1} parent=1 // pred_check
      _
    $region15: #{tpu_custom_call.1} parent=1 // pred_check_branch
      %576 = sbr.rel (0) target = $region17
    $region16: #{tpu_custom_call.1} parent=1 // pred_region
      %s578 = ssub.s32 4096, 4096
      %579 = vsyncadd [#allocation3], %s578
      %s580 = sshll.u32 [#allocation2], 4
      %s581 = int_to_ptr.vmem [resolvable:$true] %s580
      %586 = dma.vmem_to_hbm [thread:$0]  %s581, 4096, %s3, [#allocation3], 128, 128, 8
    $region17: #{tpu_custom_call.1} parent=1 // pred_fallthru
      _
    // Predicated region
    $region18: #{tpu_custom_call.1} parent=1 // pred_check
      _
    $region19: #{tpu_custom_call.1} parent=1 // pred_check_branch
      %588 = sbr.rel (0) target = $region21
    $region20: #{tpu_custom_call.1} parent=1 // pred_region
      %589 = dma.done [#allocation3], 4096
    $region21: #{tpu_custom_call.1} parent=1 // pred_fallthru
      _
    %590 = vsyncpa [#allocation3], 1

</llo_original>
